<compile_context>
chip_gen: v6e
topology: v6e:2x2x1
jax: 0.10.0
libtpu: 0.0.40
codegen_flags: <defaults>
</compile_context>

<pallas_src>
import jax
import jax.numpy as jnp
from jax.experimental import pallas as pl
from jax.experimental.pallas import tpu as pltpu


# Per-output-half block budget (bytes).  Each grid step touches ~4x this much HBM
# (one input block carrying both halves + two output blocks), and the double-buffered
# VMEM footprint is ~8x (= 32 MiB at the default), which fits under the explicit
# 48 MiB scoped-VMEM limit on all of v5e / v6e / v7x.
_BLOCK_BUDGET_BYTES = 4 * 1024 * 1024
_VMEM_LIMIT_BYTES = 48 * 1024 * 1024


def _split_copy_kernel(x_ref, o1_ref, o2_ref):
    # Pure streaming copy: the input block carries both halves along axis 1.
    x = x_ref[...]
    o1_ref[...] = x[:, 0]
    o2_ref[...] = x[:, 1]


def _divisors_desc(n):
    return [d for d in range(n, 0, -1) if n % d == 0]


def _pick_tiles_aligned(n, r, itemsize, budget_bytes):
    """Tiles (tn, tr) for the (N, 2, R, 128) view (Khalf % 128 == 0).

    tr: sublane-dense (multiple of 8) divisor of R when one exists, else full R
        (full-extent block dims are always legal).
    tn: largest divisor of N keeping one output half-block (tn*tr*128 elems)
        within the byte budget.  Prefer >= 2 total grid points (v7x megacore).
    """
    budget_elems = max(budget_bytes // itemsize, 8 * 128)

    tr_cands = [d for d in _divisors_desc(r) if d % 8 == 0] or [r]
    tr = next((d for d in tr_cands if d * 128 <= budget_elems), tr_cands[-1])

    fitting = [d for d in _divisors_desc(n) if d * tr * 128 <= budget_elems] or [1]
    tn = fitting[0]

    # If the whole array landed in a single block, split it so both v7x cores
    # get work: shrink the batch tile first (always legal), else the lane-row tile.
    if (n // tn) * (r // tr) < 2:
        smaller_tn = [d for d in fitting if d < n]
        if smaller_tn:
            tn = smaller_tn[0]
        else:
            smaller_tr = [d for d in tr_cands if d < tr and d * 128 <= budget_elems]
            if smaller_tr:
                tr = smaller_tr[0]
    return tn, tr


def _pick_tile_ragged(n, khalf, itemsize, budget_bytes):
    """Batch tile for the (N, 2, Khalf) view when Khalf % 128 != 0.

    tn must be a multiple of 8 (dense sublanes in the output block) or equal N
    (full-dim blocks are always legal).  Capped by the byte budget; prefer >= 2
    grid points when the whole batch would otherwise fit in one block.
    """
    budget_elems = max(budget_bytes // itemsize, 1)
    cands = sorted({d for d in _divisors_desc(n) if d % 8 == 0} | {n}, reverse=True)
    fitting = [d for d in cands if d * khalf <= budget_elems]
    if not fitting:
        return cands[-1]          # smallest legal tile; never OOMs VMEM needlessly
    smaller = [d for d in fitting if d < n]
    return smaller[0] if smaller else fitting[0]


def split_forward(x, block_budget_bytes=_BLOCK_BUDGET_BYTES):
    """Pallas equivalent of Split.forward: x.chunk(2, dim=1) -> (x1, x2).

    x: (N, C, H, W) with C even; returns x1, x2 of shape (N, C//2, H, W).
    """
    N, C, H, W = x.shape
    assert C % 2 == 0, "Split requires an even number of channels"
    Ch = C // 2
    Khalf = Ch * H * W
    itemsize = jnp.dtype(x.dtype).itemsize

    # Pure memory op: read N*2*Khalf, write N*2*Khalf.
    cost = pl.CostEstimate(
        flops=0, transcendentals=0, bytes_accessed=4 * N * Khalf * itemsize)

    if Khalf % 128 == 0:
        # Lane- and sublane-dense path.
        R = Khalf // 128
        xv = x.reshape(N, 2, R, 128)                     # free contiguous view
        tn, tr = _pick_tiles_aligned(N, R, itemsize, block_budget_bytes)
        grid = (N // tn, R // tr)
        in_specs = [pl.BlockSpec((tn, 2, tr, 128), lambda i, j: (i, 0, j, 0))]
        out_specs = [pl.BlockSpec((tn, tr, 128), lambda i, j: (i, j, 0))] * 2
        out_shape = (jax.ShapeDtypeStruct((N, R, 128), x.dtype),) * 2
        dims = ("parallel", "parallel")
    else:
        # Ragged Khalf: full-extent lane block (always legal), tile along batch.
        xv = x.reshape(N, 2, Khalf)                      # free contiguous view
        tn = _pick_tile_ragged(N, Khalf, itemsize, block_budget_bytes)
        grid = (N // tn,)
        in_specs = [pl.BlockSpec((tn, 2, Khalf), lambda i: (i, 0, 0))]
        out_specs = [pl.BlockSpec((tn, Khalf), lambda i: (i, 0))] * 2
        out_shape = (jax.ShapeDtypeStruct((N, Khalf), x.dtype),) * 2
        dims = ("parallel",)

    out1, out2 = pl.pallas_call(
        _split_copy_kernel,
        out_shape=out_shape,
        grid_spec=pltpu.PrefetchScalarGridSpec(
            num_scalar_prefetch=0,
            grid=grid,
            in_specs=in_specs,
            out_specs=list(out_specs),
        ),
        compiler_params=pltpu.CompilerParams(
            dimension_semantics=dims,
            vmem_limit_bytes=_VMEM_LIMIT_BYTES,
        ),
        cost_estimate=cost,
    )(xv)

    # Free contiguous reshapes back to NCHW halves.
    return out1.reshape(N, Ch, H, W), out2.reshape(N, Ch, H, W)


# TODO(synk): Gaussianize (3x3 conv + log-scale affine) is constructed by Split
# but never called in Split.forward, so it is intentionally not lowered here.


if __name__ == "__main__":
    key = jax.random.PRNGKey(0)

    # Shapes implied by the module's forward (small NCHW batch).
    N, C, H, W = 2, 4, 16, 16
    x = jax.random.normal(key, (N, C, H, W), dtype=jnp.float32)
    x1, x2 = split_forward(x)
    jax.block_until_ready((x1, x2))
    ref1, ref2 = x[:, : C // 2], x[:, C // 2:]
    assert x1.shape == ref1.shape and x2.shape == ref2.shape
    assert jnp.array_equal(x1, ref1)
    assert jnp.array_equal(x2, ref2)

    # bf16 input exercises the dtype-aware (bytes-based) tile budget.
    xb = x.astype(jnp.bfloat16)
    x1b, x2b = split_forward(xb)
    jax.block_until_ready((x1b, x2b))
    assert jnp.array_equal(x1b, xb[:, : C // 2])
    assert jnp.array_equal(x2b, xb[:, C // 2:])

    # Ragged Khalf (not a multiple of 128) exercises the capped batch-tiled fallback.
    xr = jax.random.normal(key, (2, 2, 6, 6), dtype=jnp.float32)
    x1r, x2r = split_forward(xr)
    jax.block_until_ready((x1r, x2r))
    assert jnp.array_equal(x1r, xr[:, :1])
    assert jnp.array_equal(x2r, xr[:, 1:])

    print("KERNEL_OK")
</pallas_src>

<mosaic_0001>
module attributes {stable_mosaic.version = 11 : i64} {
  func.func @_split_copy_kernel(%arg0: i32, %arg1: i32, %arg2: memref<1x2x4x128xf32, #tpu.memory_space<vmem>>, %arg3: memref<1x4x128xf32, #tpu.memory_space<vmem>>, %arg4: memref<1x4x128xf32, #tpu.memory_space<vmem>>) attributes {dimension_semantics = [#tpu.dimension_semantics<parallel>, #tpu.dimension_semantics<parallel>], iteration_bounds = array<i64: 2, 1>, scalar_prefetch = 0 : i64, scratch_operands = 0 : i64, tpu.core_type = #tpu.core_type<tc>, window_params = [{transform_indices = @transform_0, window_bounds = array<i64: 1, 2, 4, 128>}, {transform_indices = @transform_1, window_bounds = array<i64: 1, 4, 128>}, {transform_indices = @transform_2, window_bounds = array<i64: 1, 4, 128>}]} {
    %c0 = arith.constant 0 : index
    %c0_0 = arith.constant 0 : index
    %c0_1 = arith.constant 0 : index
    %c0_2 = arith.constant 0 : index
    %0 = vector.load %arg2[%c0, %c0_0, %c0_1, %c0_2] : memref<1x2x4x128xf32, #tpu.memory_space<vmem>>, vector<1x2x4x128xf32>
    %1 = vector.extract_strided_slice %0 {offsets = [0, 0, 0, 0], sizes = [1, 1, 4, 128], strides = [1, 1, 1, 1]} : vector<1x2x4x128xf32> to vector<1x1x4x128xf32>
    %2 = vector.shape_cast %1 : vector<1x1x4x128xf32> to vector<1x4x128xf32>
    %c0_3 = arith.constant 0 : index
    %c0_4 = arith.constant 0 : index
    %c0_5 = arith.constant 0 : index
    %3 = vector.load %arg3[%c0_3, %c0_4, %c0_5] : memref<1x4x128xf32, #tpu.memory_space<vmem>>, vector<1x4x128xf32>
    tpu.vector_store %arg3[%c0_3, %c0_4, %c0_5], %2 {strides = array<i32>} : memref<1x4x128xf32, #tpu.memory_space<vmem>>, vector<1x4x128xf32>,
    %4 = vector.extract_strided_slice %0 {offsets = [0, 1, 0, 0], sizes = [1, 1, 4, 128], strides = [1, 1, 1, 1]} : vector<1x2x4x128xf32> to vector<1x1x4x128xf32>
    %5 = vector.shape_cast %4 : vector<1x1x4x128xf32> to vector<1x4x128xf32>
    %c0_6 = arith.constant 0 : index
    %c0_7 = arith.constant 0 : index
    %c0_8 = arith.constant 0 : index
    %6 = vector.load %arg4[%c0_6, %c0_7, %c0_8] : memref<1x4x128xf32, #tpu.memory_space<vmem>>, vector<1x4x128xf32>
    tpu.vector_store %arg4[%c0_6, %c0_7, %c0_8], %5 {strides = array<i32>} : memref<1x4x128xf32, #tpu.memory_space<vmem>>, vector<1x4x128xf32>,
    return
  }
  func.func @transform_0(%arg0: i32, %arg1: i32) -> (i32, i32, i32, i32) {
    %c0_i32 = arith.constant 0 : i32
    %c0_i32_0 = arith.constant 0 : i32
    %c0_i32_1 = arith.constant 0 : i32
    return %arg0, %c0_i32, %arg1, %c0_i32_0 : i32, i32, i32, i32
  }
  func.func @transform_1(%arg0: i32, %arg1: i32) -> (i32, i32, i32) {
    %c0_i32 = arith.constant 0 : i32
    %c0_i32_0 = arith.constant 0 : i32
    return %arg0, %arg1, %c0_i32 : i32, i32, i32
  }
  func.func @transform_2(%arg0: i32, %arg1: i32) -> (i32, i32, i32) {
    %c0_i32 = arith.constant 0 : i32
    %c0_i32_0 = arith.constant 0 : i32
    return %arg0, %arg1, %c0_i32 : i32, i32, i32
  }
}

</mosaic_0001>

<llo_original>
// kernel: tpu_custom_call.1
$region0: #{tpu_custom_call.1}
  #allocation0 [shape = 'u32[]', space=smem, size = 0x4, offset = 0x4, fixed_abs, tag = 'smem constant byte address 0x4 - core index']
  #allocation1 [shape = 'u32[144,128]{1,0:T(1,128)}', space=vmem, size = 0x12000, scoped, tag = 'internal scratch']
  %s0 = inlined_call_operand.hbm [shape: f32[2,2,4,128], index: 0, kind: input, shape index: {}]
  %s1 = inlined_call_operand.hbm [shape: f32[2,4,128], index: 1, kind: output, shape index: {0}]
  %s2 = inlined_call_operand.hbm [shape: f32[2,4,128], index: 2, kind: output, shape index: {1}]
  %3 = xla_tuple %s1, %s2
  %s4 = sld [smem:[#allocation0]]
  $region49: #{tpu_custom_call.1} parent=0
    _
  %s6 = ssub.s32 1, %s4
  %s7 = scalar_select 0, %s6, %s4
  $region1: #{tpu_custom_call.1} parent=0
    #allocation2 [shape = 'u8[8192]{0}', space=vmem, size = 0x2000, scoped, tag = 'input window, operand 0']
    #allocation3 [shape = 's32[2]{0}', space=sflag, size = 0x8, scoped, tag = 'scoped memory for tpu_custom_call.1']
    #allocation4 [shape = 's32[2]{0}', space=sflag, size = 0x8, scoped, tag = 'scoped memory for tpu_custom_call.1']
    #allocation5 [shape = 'u8[4096]{0}', space=vmem, size = 0x1000, scoped, tag = 'output window, operand 0']
    #allocation6 [shape = 'u8[4096]{0}', space=vmem, size = 0x1000, scoped, tag = 'output window, operand 1']
    #allocation7 [shape = 's32[2]{0}', space=sflag, size = 0x8, scoped, tag = 'scoped memory for tpu_custom_call.1']
    %8 = vsyncpa [#allocation3], 0
    %s9 = scalar_lea.sflag [#allocation3], 1
    %10 = vsyncpa %s9, 0
    %11 = vsyncpa [#allocation4], 0
    %s12 = scalar_lea.sflag [#allocation4], 1
    %13 = vsyncpa %s12, 0
    %14 = vsyncpa [#allocation7], 0
    %s15 = scalar_lea.sflag [#allocation7], 1
    %16 = vsyncpa %s15, 0
    loop: start=0, step=1, limit=4
    $region2: #{tpu_custom_call.1} parent=1 // loop_pre_header
      _
    $region3: #{tpu_custom_call.1} parent=1 // loop_header
      %s18 = sphi 0, %s22
      %p19 = scmp.ge.s32.totalorder %s18, 4
      %s25 = sphi 0, %s37
      %s26 = sphi 0, %s33
      %s27 = sphi 0, %s25
      %s28 = sphi 0, %s26
      %s29 = sphi 0, %s27
      %s30 = sphi 0, %s28
      %s42 = sphi 0, %s44
      %s45 = sphi 0, %s42
      %s46 = sphi 0, %s45
      %s62 = sphi 0, %s46
      %s70 = sphi 0, %s72
      %s73 = sphi 0, %s70
      %s74 = sphi 0, %s73
      %s90 = sphi 0, %s74
      %s98 = sphi 0, %s100
      %s101 = sphi 0, %s98
      %s102 = sphi 0, %s101
      %s118 = sphi 0, %s102
    $region4: #{tpu_custom_call.1} parent=1 // loop_header_branch
      %21 = sbr.rel (%p19) target = $region8
    $region5: #{tpu_custom_call.1} parent=1 // loop_body
      %s23 = ssub.s32 %s18, 1
      %s24 = ssub.s32 %s18, 2
      %s31 = sadd.s32 1, %s26
      %p32 = scmp.ge.s32.totalorder %s31, 1
      %s33 = scalar_select %p32, 0, %s31
      %s34 = sadd.s32 1, %s25
      %s35 = scalar_select %p32, %s34, %s25
      %p36 = scmp.ge.s32.totalorder %s35, 2
      %s37 = scalar_select %p36, 0, %s35
      %s38 = ssub.s32 %s25, %s37
      %s39 = ssub.s32 %s26, %s33
      %s40 = sor.u32 %s38, %s39
      %p41 = scmp.eq.s32.totalorder %s40, 0
      %s43 = sadd.s32 %s42, 1
      %s44 = scalar_select %p41, %s42, %s43
      %p47 = pneg %p41
      %p48 = scmp.eq.s32.totalorder %s18, 1
      %p49 = por %p47, %p48
      %p50 = scmp.ne.s32.totalorder %s42, %s45
      %p51 = scmp.eq.s32.totalorder %s18, 0
      %p52 = por %p50, %p51
      %p53 = scmp.ne.s32.totalorder %s42, %s45
      %p54 = scmp.eq.s32.totalorder %s23, 1
      %p55 = por %p53, %p54
      %p56 = scmp.ne.s32.totalorder %s45, %s46
      %p57 = scmp.eq.s32.totalorder %s23, 0
      %p58 = por %p56, %p57
      %p59 = scmp.ne.s32.totalorder %s45, %s46
      %p60 = scmp.eq.s32.totalorder %s24, 1
      %p61 = por %p59, %p60
      %p63 = scmp.ne.s32.totalorder %s46, %s62
      %p64 = scmp.eq.s32.totalorder %s24, 0
      %p65 = por %p63, %p64
      %s66 = ssub.s32 %s25, %s37
      %s67 = ssub.s32 %s26, %s33
      %s68 = sor.u32 %s66, %s67
      %p69 = scmp.eq.s32.totalorder %s68, 0
      %s71 = sadd.s32 %s70, 1
      %s72 = scalar_select %p69, %s70, %s71
      %p75 = pneg %p69
      %p76 = scmp.eq.s32.totalorder %s18, 1
      %p77 = por %p75, %p76
      %p78 = scmp.ne.s32.totalorder %s70, %s73
      %p79 = scmp.eq.s32.totalorder %s18, 0
      %p80 = por %p78, %p79
      %p81 = scmp.ne.s32.totalorder %s70, %s73
      %p82 = scmp.eq.s32.totalorder %s23, 1
      %p83 = por %p81, %p82
      %p84 = scmp.ne.s32.totalorder %s73, %s74
      %p85 = scmp.eq.s32.totalorder %s23, 0
      %p86 = por %p84, %p85
      %p87 = scmp.ne.s32.totalorder %s73, %s74
      %p88 = scmp.eq.s32.totalorder %s24, 1
      %p89 = por %p87, %p88
      %p91 = scmp.ne.s32.totalorder %s74, %s90
      %p92 = scmp.eq.s32.totalorder %s24, 0
      %p93 = por %p91, %p92
      %s94 = ssub.s32 %s25, %s37
      %s95 = ssub.s32 %s26, %s33
      %s96 = sor.u32 %s94, %s95
      %p97 = scmp.eq.s32.totalorder %s96, 0
      %s99 = sadd.s32 %s98, 1
      %s100 = scalar_select %p97, %s98, %s99
      %p103 = pneg %p97
      %p104 = scmp.eq.s32.totalorder %s18, 1
      %p105 = por %p103, %p104
      %p106 = scmp.ne.s32.totalorder %s98, %s101
      %p107 = scmp.eq.s32.totalorder %s18, 0
      %p108 = por %p106, %p107
      %p109 = scmp.ne.s32.totalorder %s98, %s101
      %p110 = scmp.eq.s32.totalorder %s23, 1
      %p111 = por %p109, %p110
      %p112 = scmp.ne.s32.totalorder %s101, %s102
      %p113 = scmp.eq.s32.totalorder %s23, 0
      %p114 = por %p112, %p113
      %p115 = scmp.ne.s32.totalorder %s101, %s102
      %p116 = scmp.eq.s32.totalorder %s24, 1
      %p117 = por %p115, %p116
      %p119 = scmp.ne.s32.totalorder %s102, %s118
      %p120 = scmp.eq.s32.totalorder %s24, 0
      %p121 = por %p119, %p120
      %p122 = scmp.le.s32.totalorder 1, %s18
      %p123 = scmp.lt.s32.totalorder %s18, 3
      %p124 = pnand %p122, %p123
      %p125 = pneg %p124
      // Predicated region
      $region9: #{tpu_custom_call.1} parent=5 // pred_check
        _
      $region10: #{tpu_custom_call.1} parent=5 // pred_check_branch
        %127 = sbr.rel (%p124) target = $region12
      $region11: #{tpu_custom_call.1} parent=5 // pred_region
        %s128 = ssub.s32 %s18, 1
      $region12: #{tpu_custom_call.1} parent=5 // pred_fallthru
        _
      %p129 = scmp.lt.s32.totalorder %s18, 2
      // Predicated region
      $region13: #{tpu_custom_call.1} parent=5 // pred_check
        %p130 = pneg %p129
      $region14: #{tpu_custom_call.1} parent=5 // pred_check_branch
        %132 = sbr.rel (%p130) target = $region16
      $region15: #{tpu_custom_call.1} parent=5 // pred_region
        // Predicated region
        $region17: #{tpu_custom_call.1} parent=15 // pred_check
          %p133 = pneg %p52
        $region18: #{tpu_custom_call.1} parent=15 // pred_check_branch
          %135 = sbr.rel (%p133) target = $region20
        $region19: #{tpu_custom_call.1} parent=15 // pred_region
          %s136 = sand.u32 %s42, 1
          %s137 = scalar_lea.sflag [#allocation3], %s136
          %s138 = sand.u32 %s42, 1
          %s139 = smul.addr %s138, 8
          %s140 = scalar_lea.vmem [#allocation2], %s139
          %s142 = ssub.s32 128, 128
          %143 = vsyncadd %s137, %s142
          %s144 = smul.addr %s25, 2
          %s145 = sadd.s32 %s26, %s144
          %s146 = smul.addr %s145, 64
          %s147 = scalar_lea.hbm %s0, %s146
          %s148 = sshll.u32 %s140, 4
          %s149 = int_to_ptr.vmem [resolvable:$true] %s148
          %154 = dma.hbm_to_vmem [thread:$0]  %s147, 128, %s149, %s137, 64, 64, 4
        $region20: #{tpu_custom_call.1} parent=15 // pred_fallthru
          _
      $region16: #{tpu_custom_call.1} parent=5 // pred_fallthru
        _
      %p155 = scmp.le.s32.totalorder 1, %s18
      %p156 = scmp.lt.s32.totalorder %s18, 3
      %p157 = pnand %p155, %p156
      %p158 = pneg %p157
      // Predicated region
      $region21: #{tpu_custom_call.1} parent=5 // pred_check
        _
      $region22: #{tpu_custom_call.1} parent=5 // pred_check_branch
        %160 = sbr.rel (%p157) target = $region24
      $region23: #{tpu_custom_call.1} parent=5 // pred_region
        %s161 = ssub.s32 %s18, 1
        %s162 = sand.u32 %s45, 1
        %s163 = scalar_lea.sflag [#allocation3], %s162
        %s164 = sand.u32 %s45, 1
        %s165 = smul.addr %s164, 8
        %s166 = scalar_lea.vmem [#allocation2], %s165
        // Predicated region
        $region25: #{tpu_custom_call.1} parent=23 // pred_check
          %p167 = pneg %p58
        $region26: #{tpu_custom_call.1} parent=23 // pred_check_branch
          %169 = sbr.rel (%p167) target = $region28
        $region27: #{tpu_custom_call.1} parent=23 // pred_region
          %170 = dma.done %s163, 128
        $region28: #{tpu_custom_call.1} parent=23 // pred_fallthru
          _
        %s171 = sand.u32 %s45, 1
        %s172 = scalar_lea.sflag [#allocation3], %s171
        %s173 = sand.u32 %s45, 1
        %s174 = smul.addr %s173, 8
        %s175 = scalar_lea.vmem [#allocation2], %s174
        %p176 = pneg %p58
        %p177 = pneg %p55
        %p178 = pneg %p86
        %p179 = pneg %p83
        %s180 = sand.u32 %s73, 1
        %s181 = scalar_lea.sflag [#allocation4], %s180
        %s182 = sand.u32 %s73, 1
        %s183 = smul.addr %s182, 4
        %s184 = scalar_lea.vmem [#allocation5], %s183
        %p185 = pneg %p114
        %p186 = pneg %p111
        %s187 = sand.u32 %s101, 1
        %s188 = scalar_lea.sflag [#allocation7], %s187
        %s189 = sand.u32 %s101, 1
        %s190 = smul.addr %s189, 4
        %s191 = scalar_lea.vmem [#allocation6], %s190
        %v192 = vld [vmem:[%s166] sm:$0xf]
        %v193 = vld [vmem:[%s166 + $0x4] sm:$0xf]
        %194 = vst [vmem:[%s184] sm:$0xf] %v192
        %195 = vst [vmem:[%s191] sm:$0xf] %v193
        %s196 = sand.u32 %s73, 1
        %s197 = scalar_lea.sflag [#allocation4], %s196
        %s198 = sand.u32 %s73, 1
        %s199 = smul.addr %s198, 4
        %s200 = scalar_lea.vmem [#allocation5], %s199
        %s201 = sand.u32 %s101, 1
        %s202 = scalar_lea.sflag [#allocation7], %s201
        %s203 = sand.u32 %s101, 1
        %s204 = smul.addr %s203, 4
        %s205 = scalar_lea.vmem [#allocation6], %s204
        // Predicated region
        $region29: #{tpu_custom_call.1} parent=23 // pred_check
          %p206 = pneg %p83
        $region30: #{tpu_custom_call.1} parent=23 // pred_check_branch
          %208 = sbr.rel (%p206) target = $region32
        $region31: #{tpu_custom_call.1} parent=23 // pred_region
          %s210 = ssub.s32 64, 64
          %211 = vsyncadd %s197, %s210
          %s212 = sadd.s32 %s28, %s27
          %s213 = smul.addr %s212, 64
          %s214 = scalar_lea.hbm %s1, %s213
          %s216 = sshll.u32 %s200, 4
          %s217 = int_to_ptr.vmem [resolvable:$true] %s216
          %219 = dma.vmem_to_hbm [thread:$0]  %s217, 64, %s214, %s197
        $region32: #{tpu_custom_call.1} parent=23 // pred_fallthru
          _
        // Predicated region
        $region33: #{tpu_custom_call.1} parent=23 // pred_check
          %p220 = pneg %p111
        $region34: #{tpu_custom_call.1} parent=23 // pred_check_branch
          %222 = sbr.rel (%p220) target = $region36
        $region35: #{tpu_custom_call.1} parent=23 // pred_region
          %s224 = ssub.s32 64, 64
          %225 = vsyncadd %s202, %s224
          %s226 = sadd.s32 %s28, %s27
          %s227 = smul.addr %s226, 64
          %s228 = scalar_lea.hbm %s2, %s227
          %s230 = sshll.u32 %s205, 4
          %s231 = int_to_ptr.vmem [resolvable:$true] %s230
          %233 = dma.vmem_to_hbm [thread:$0]  %s231, 64, %s228, %s202
        $region36: #{tpu_custom_call.1} parent=23 // pred_fallthru
          _
      $region24: #{tpu_custom_call.1} parent=5 // pred_fallthru
        _
      %p234 = scmp.le.s32.totalorder 2, %s18
      // Predicated region
      $region37: #{tpu_custom_call.1} parent=5 // pred_check
        %p235 = pneg %p234
      $region38: #{tpu_custom_call.1} parent=5 // pred_check_branch
        %237 = sbr.rel (%p235) target = $region40
      $region39: #{tpu_custom_call.1} parent=5 // pred_region
        %s238 = ssub.s32 %s18, 2
        // Predicated region
        $region41: #{tpu_custom_call.1} parent=39 // pred_check
          %p239 = pneg %p89
        $region42: #{tpu_custom_call.1} parent=39 // pred_check_branch
          %241 = sbr.rel (%p239) target = $region44
        $region43: #{tpu_custom_call.1} parent=39 // pred_region
          %s242 = sand.u32 %s74, 1
          %s243 = scalar_lea.sflag [#allocation4], %s242
          %s244 = sand.u32 %s74, 1
          %s245 = smul.addr %s244, 4
          %s246 = scalar_lea.vmem [#allocation5], %s245
          %247 = dma.done %s243, 64
        $region44: #{tpu_custom_call.1} parent=39 // pred_fallthru
          _
        // Predicated region
        $region45: #{tpu_custom_call.1} parent=39 // pred_check
          %p248 = pneg %p117
        $region46: #{tpu_custom_call.1} parent=39 // pred_check_branch
          %250 = sbr.rel (%p248) target = $region48
        $region47: #{tpu_custom_call.1} parent=39 // pred_region
          %s251 = sand.u32 %s102, 1
          %s252 = scalar_lea.sflag [#allocation7], %s251
          %s253 = sand.u32 %s102, 1
          %s254 = smul.addr %s253, 4
          %s255 = scalar_lea.vmem [#allocation6], %s254
          %256 = dma.done %s252, 64
        $region48: #{tpu_custom_call.1} parent=39 // pred_fallthru
          _
      $region40: #{tpu_custom_call.1} parent=5 // pred_fallthru
        _
    $region6: #{tpu_custom_call.1} parent=1 // loop_footer
      %s22 = sadd.s32 1, %s18
    $region7: #{tpu_custom_call.1} parent=1 // loop_footer_branch
      %17 = sbr.rel target = $region3
    $region8: #{tpu_custom_call.1} parent=1 // loop_exit
      _
    %257 = vsyncpa [#allocation3], 1
    %s258 = scalar_lea.sflag [#allocation3], 1
    %259 = vsyncpa %s258, 1
    %260 = vsyncpa [#allocation4], 1
    %s261 = scalar_lea.sflag [#allocation4], 1
    %262 = vsyncpa %s261, 1
    %263 = vsyncpa [#allocation7], 1
    %s264 = scalar_lea.sflag [#allocation7], 1
    %265 = vsyncpa %s264, 1

</llo_original>
